<compile_context>
chip_gen: v7x
topology: tpu7x:2x2x1
jax: 0.10.0
libtpu: 0.0.40
codegen_flags: <defaults>
</compile_context>

<pallas_src>
import jax
import jax.numpy as jnp
from jax.experimental import pallas as pl
from jax.experimental.pallas import tpu as pltpu


def _round_up(x: int, m: int) -> int:
    return ((x + m - 1) // m) * m


# ----------------------------------------------------------------------------
# Pallas kernel: tiled over node-row blocks; pooled hidden vector accumulates
# in a VMEM scratch; the tiny layer-2 matmul runs once on the last tile.
# ----------------------------------------------------------------------------
def gnn_forward_kernel(scat_ref, msg_ref, abar_ref, b1_ref, w2_ref, b2_ref,
                       out_ref, acc_ref):
    i = pl.program_id(0)

    @pl.when(i == 0)
    def _init():
        acc_ref[...] = jnp.zeros_like(acc_ref)

    # GCN layer 1 for this row tile (scatter-as-matmul on the MXU):
    #   h_tile = relu(A_hat[tile, :] @ (X @ W1) + b1)
    h = jnp.dot(scat_ref[...], msg_ref[...],
                preferred_element_type=jnp.float32)
    h = jnp.maximum(h + b1_ref[...], 0.0)
    # TODO(synk): nn.Dropout is identity in eval mode; training-mode dropout
    # (pltpu.prng_random_bits mask) is not implemented here.

    # Layer-2 propagation folded through the mean pool:
    #   acc += a_bar[tile] @ h_tile        where a_bar = (1/N) * ones @ A_hat
    acc_ref[...] += jnp.dot(abar_ref[...], h.astype(abar_ref.dtype),
                            preferred_element_type=jnp.float32)

    @pl.when(i == pl.num_programs(0) - 1)
    def _finalize():
        pooled = acc_ref[...].astype(w2_ref.dtype)          # (1, H_pad)
        out = jnp.dot(pooled, w2_ref[...],
                      preferred_element_type=jnp.float32) + b2_ref[...]
        out_ref[...] = out.astype(out_ref.dtype)


# ----------------------------------------------------------------------------
# Wrapper: graph preprocessing (gathers + vectorized compares only, no XLA
# scatters), padding to lane-dense shapes, and the pallas_call.
# ----------------------------------------------------------------------------
def code_embedder_gnn_forward(node_type_ids, edge_index, params,
                              *, compute_dtype=jnp.float32, row_tile=256):
    """node_type_ids: (N,) int32; edge_index: (2, E) int32 (src row 0, dst row 1).

    params: 'emb' (V,D), 'w1' (D,H), 'b1' (1,H), 'w2' (H,O), 'b2' (1,O).
    compute_dtype: jnp.float32 or jnp.bfloat16 (matmul operands; accumulation is f32).
    row_tile: node-row tile size when N is large; must be a multiple of 128.
    """
    assert row_tile % 128 == 0
    emb = params["emb"].astype(jnp.float32)
    w1 = params["w1"].astype(jnp.float32)
    b1 = params["b1"].astype(jnp.float32)
    w2 = params["w2"].astype(jnp.float32)
    b2 = params["b2"].astype(jnp.float32)

    n = int(node_type_ids.shape[0])
    e = int(edge_index.shape[1])
    hidden = int(w1.shape[1])
    out_dim = int(w2.shape[1])

    node_iota = jnp.arange(n, dtype=jnp.int32)
    src_e = edge_index[0].astype(jnp.int32)
    dst_e = edge_index[1].astype(jnp.int32)

    # --- GCN symmetric normalization with self loops (PyG gcn_norm semantics).
    # deg[j] = (# incoming edges to j) + 1, via a one-hot column sum (no scatter).
    deg = 1.0 + jnp.sum(
        (dst_e[:, None] == node_iota[None, :]).astype(jnp.float32), axis=0)
    dinv = jax.lax.rsqrt(deg)

    src_all = jnp.concatenate([src_e, node_iota])            # edges + self loops
    dst_all = jnp.concatenate([dst_e, node_iota])
    vals = dinv[src_all] * dinv[dst_all]                     # (E_tot,)

    # --- Fold Embedding into W1:  X @ W1 == (emb @ W1)[ids]   (removes 2 matmuls).
    w1f = jnp.dot(emb, w1)                                   # (V, H)
    x1 = jnp.take(w1f, node_type_ids, axis=0)                # (N, H)
    msg = jnp.take(x1, src_all, axis=0)                      # (E_tot, H) source features

    # --- Scatter-as-matmul operand: weighted dst one-hot, so A_hat @ X1 == scat @ msg.
    scat = (node_iota[:, None] == dst_all[None, :]).astype(jnp.float32) * vals[None, :]

    # --- Pooled adjacency row a_bar = (1/N) * ones(1,N) @ A_hat
    #                               = (1/N) * segment-sum of vals over src.
    a_bar = (jnp.sum(
        (node_iota[:, None] == src_all[None, :]).astype(jnp.float32)
        * vals[None, :], axis=1) / n)[None, :]               # (1, N)

    # --- Pad to TPU-friendly shapes (lane-dense 128-wide features, 8-aligned rows).
    e_tot = e + n
    e_pad = _round_up(max(e_tot, 128), 128)
    h_pad = _round_up(max(hidden, 128), 128)
    o_pad = _round_up(max(out_dim, 128), 128)
    if n <= row_tile:
        n_pad = _round_up(max(n, 8), 8)
        tm = n_pad                                           # single full-extent tile
    else:
        tm = row_tile
        n_pad = _round_up(n, tm)
    grid = (n_pad // tm,)
    # TODO(synk): for very large graphs also tile the edge (E) axis / use
    # scalar-prefetched edge lists instead of the dense (N, E_tot) scatter operand.

    def pad2(a, r, c):
        return jnp.pad(a, ((0, r - a.shape[0]), (0, c - a.shape[1])))

    scat_p = pad2(scat, n_pad, e_pad).astype(compute_dtype)
    msg_p = pad2(msg, e_pad, h_pad).astype(compute_dtype)
    abar_p = pad2(a_bar, 1, n_pad).astype(compute_dtype)
    b1_p = pad2(b1, 1, h_pad)                                # keep biases f32
    w2_p = pad2(w2, h_pad, o_pad).astype(compute_dtype)
    b2_p = pad2(b2, 1, o_pad)

    flops = 2 * n_pad * e_pad * h_pad + 2 * n_pad * h_pad + 2 * h_pad * o_pad
    bytes_accessed = sum(int(x.size) * x.dtype.itemsize
                         for x in (scat_p, msg_p, abar_p, b1_p, w2_p, b2_p))
    bytes_accessed += o_pad * 4

    out_pad = pl.pallas_call(
        gnn_forward_kernel,
        out_shape=jax.ShapeDtypeStruct((1, o_pad), jnp.float32),
        grid_spec=pltpu.PrefetchScalarGridSpec(
            num_scalar_prefetch=0,
            grid=grid,
            in_specs=[
                pl.BlockSpec((tm, e_pad), lambda i: (i, 0)),     # A_hat scatter tile
                pl.BlockSpec((e_pad, h_pad), lambda i: (0, 0)),  # gathered X @ W1
                pl.BlockSpec((1, tm), lambda i: (0, i)),         # pooled-adjacency row
                pl.BlockSpec((1, h_pad), lambda i: (0, 0)),      # b1
                pl.BlockSpec((h_pad, o_pad), lambda i: (0, 0)),  # w2
                pl.BlockSpec((1, o_pad), lambda i: (0, 0)),      # b2
            ],
            out_specs=pl.BlockSpec((1, o_pad), lambda i: (0, 0)),
            scratch_shapes=[pltpu.VMEM((1, h_pad), jnp.float32)],
        ),
        compiler_params=pltpu.CompilerParams(
            # row axis reduces into the shared pooled output -> reduction ("arbitrary")
            dimension_semantics=("arbitrary",)),
        cost_estimate=pl.CostEstimate(
            flops=flops, transcendentals=0, bytes_accessed=bytes_accessed),
    )(scat_p, msg_p, abar_p, b1_p, w2_p, b2_p)

    return out_pad[:, :out_dim]


# ----------------------------------------------------------------------------
# Pure-JAX reference (dense adjacency, same GCN math) for correctness checks.
# ----------------------------------------------------------------------------
def reference_forward(node_type_ids, edge_index, params):
    emb, w1, b1, w2, b2 = (params[k] for k in ("emb", "w1", "b1", "w2", "b2"))
    n = node_type_ids.shape[0]
    src = jnp.concatenate([edge_index[0], jnp.arange(n, dtype=jnp.int32)])
    dst = jnp.concatenate([edge_index[1], jnp.arange(n, dtype=jnp.int32)])
    deg = jnp.zeros((n,), jnp.float32).at[dst].add(1.0)
    dinv = jax.lax.rsqrt(deg)
    adj = jnp.zeros((n, n), jnp.float32).at[dst, src].add(dinv[src] * dinv[dst])
    x = emb[node_type_ids]
    h = jnp.maximum(adj @ x @ w1 + b1, 0.0)
    h = adj @ h @ w2 + b2
    return jnp.mean(h, axis=0, keepdims=True)


if __name__ == "__main__":
    # Module hyper-parameters (num_gnn_layers = 2 is hard-wired into the kernel).
    node_vocab_size = 32
    node_embedding_dim = 32
    hidden_gnn_dim = 32
    out_graph_embedding_dim = 32

    key = jax.random.PRNGKey(0)
    k_emb, k_w1, k_b1, k_w2, k_b2, k_ids1, k_ids2 = jax.random.split(key, 7)

    params = {
        "emb": jax.random.normal(k_emb, (node_vocab_size, node_embedding_dim),
                                 jnp.float32) * 0.1,
        "w1": jax.random.normal(k_w1, (node_embedding_dim, hidden_gnn_dim),
                                jnp.float32) * 0.1,
        "b1": jax.random.normal(k_b1, (1, hidden_gnn_dim), jnp.float32) * 0.01,
        "w2": jax.random.normal(k_w2, (hidden_gnn_dim, out_graph_embedding_dim),
                                jnp.float32) * 0.1,
        "b2": jax.random.normal(k_b2, (1, out_graph_embedding_dim),
                                jnp.float32) * 0.01,
    }

    # --- Small synthetic AST graph (8 nodes, parent->child edges) ---
    node_type_ids = jax.random.randint(k_ids1, (8,), 0, node_vocab_size,
                                       dtype=jnp.int32)
    edge_index = jnp.array(
        [[0, 0, 1, 1, 2, 2, 6],      # parents (source)
         [1, 2, 3, 4, 5, 6, 7]],     # children (target)
        dtype=jnp.int32)

    out = jax.block_until_ready(
        code_embedder_gnn_forward(node_type_ids, edge_index, params))
    ref = reference_forward(node_type_ids, edge_index, params)
    assert out.shape == (1, out_graph_embedding_dim)
    assert jnp.allclose(out, ref, atol=1e-4, rtol=1e-4)

    # bf16 compute path (halves DMA bytes, 2x MXU rate on v6e/v7x); f32 accumulation.
    out_bf16 = jax.block_until_ready(
        code_embedder_gnn_forward(node_type_ids, edge_index, params,
                                  compute_dtype=jnp.bfloat16))
    assert jnp.allclose(out_bf16, ref, atol=2e-2, rtol=2e-2)

    # --- Larger deterministic binary-tree AST: exercises the multi-tile grid path ---
    n_big = 300
    ids_big = jax.random.randint(k_ids2, (n_big,), 0, node_vocab_size,
                                 dtype=jnp.int32)
    children = jnp.arange(1, n_big, dtype=jnp.int32)
    parents = (children - 1) // 2
    edge_big = jnp.stack([parents, children])
    out_big = jax.block_until_ready(
        code_embedder_gnn_forward(ids_big, edge_big, params, row_tile=256))
    ref_big = reference_forward(ids_big, edge_big, params)
    assert jnp.allclose(out_big, ref_big, atol=1e-4, rtol=1e-4)

    print("KERNEL_OK")
</pallas_src>

<mosaic_0001>
module attributes {stable_mosaic.version = 11 : i64} {
  func.func @gnn_forward_kernel(%arg0: i32, %arg1: memref<8x128xf32, #tpu.memory_space<vmem>>, %arg2: memref<128x128xf32, #tpu.memory_space<vmem>>, %arg3: memref<1x8xf32, #tpu.memory_space<vmem>>, %arg4: memref<1x128xf32, #tpu.memory_space<vmem>>, %arg5: memref<128x128xf32, #tpu.memory_space<vmem>>, %arg6: memref<1x128xf32, #tpu.memory_space<vmem>>, %arg7: memref<1x128xf32, #tpu.memory_space<vmem>>, %arg8: memref<1x128xf32, #tpu.memory_space<vmem>>) attributes {dimension_semantics = [#tpu.dimension_semantics<arbitrary>], iteration_bounds = array<i64: 1>, scalar_prefetch = 0 : i64, scratch_operands = 1 : i64, tpu.core_type = #tpu.core_type<tc>, window_params = [{transform_indices = @transform_0, window_bounds = array<i64: 8, 128>}, {pipeline_mode = #tpu.pipeline_mode<synchronous>, transform_indices = @transform_1, window_bounds = array<i64: 128, 128>}, {transform_indices = @transform_2, window_bounds = array<i64: 1, 8>}, {pipeline_mode = #tpu.pipeline_mode<synchronous>, transform_indices = @transform_3, window_bounds = array<i64: 1, 128>}, {pipeline_mode = #tpu.pipeline_mode<synchronous>, transform_indices = @transform_4, window_bounds = array<i64: 128, 128>}, {pipeline_mode = #tpu.pipeline_mode<synchronous>, transform_indices = @transform_5, window_bounds = array<i64: 1, 128>}, {pipeline_mode = #tpu.pipeline_mode<synchronous>, transform_indices = @transform_6, window_bounds = array<i64: 1, 128>}]} {
    %c0_i32 = arith.constant 0 : i32
    %0 = arith.cmpi eq, %arg0, %c0_i32 : i32
    %1 = arith.extui %0 : i1 to i32
    %c0_i32_0 = arith.constant 0 : i32
    %2 = arith.cmpi ne, %1, %c0_i32_0 : i32
    scf.if %2 {
      %cst_16 = arith.constant 0.000000e+00 : f32
      %19 = vector.broadcast %cst_16 : f32 to vector<1x128xf32>
      %c0_17 = arith.constant 0 : index
      %c0_18 = arith.constant 0 : index
      %20 = vector.load %arg8[%c0_17, %c0_18] : memref<1x128xf32, #tpu.memory_space<vmem>>, vector<1x128xf32>
      tpu.vector_store %arg8[%c0_17, %c0_18], %19 {strides = array<i32>} : memref<1x128xf32, #tpu.memory_space<vmem>>, vector<1x128xf32>,
    } else {
    }
    %c0 = arith.constant 0 : index
    %c0_1 = arith.constant 0 : index
    %3 = vector.load %arg1[%c0, %c0_1] : memref<8x128xf32, #tpu.memory_space<vmem>>, vector<8x128xf32>
    %c0_2 = arith.constant 0 : index
    %c0_3 = arith.constant 0 : index
    %4 = vector.load %arg2[%c0_2, %c0_3] : memref<128x128xf32, #tpu.memory_space<vmem>>, vector<128x128xf32>
    %cst = arith.constant dense<0.000000e+00> : vector<8x128xf32>
    %5 = tpu.matmul %3, %4, %cst {dimension_numbers = #tpu.dot_dimension_numbers<[1], [0], [0], [1], [0, 0, 1, 1], [], []>} : vector<8x128xf32>, vector<128x128xf32>, vector<8x128xf32> -> vector<8x128xf32>
    %c0_4 = arith.constant 0 : index
    %c0_5 = arith.constant 0 : index
    %6 = vector.load %arg4[%c0_4, %c0_5] : memref<1x128xf32, #tpu.memory_space<vmem>>, vector<1x128xf32>
    %7 = vector.broadcast %6 : vector<1x128xf32> to vector<8x128xf32>
    %8 = arith.addf %5, %7 : vector<8x128xf32>
    %cst_6 = arith.constant 0.000000e+00 : f32
    %9 = vector.broadcast %cst_6 : f32 to vector<8x128xf32>
    %10 = arith.maximumf %8, %9 : vector<8x128xf32>
    %c0_7 = arith.constant 0 : index
    %c0_8 = arith.constant 0 : index
    %11 = vector.load %arg8[%c0_7, %c0_8] : memref<1x128xf32, #tpu.memory_space<vmem>>, vector<1x128xf32>
    %c0_9 = arith.constant 0 : index
    %c0_10 = arith.constant 0 : index
    %12 = vector.load %arg3[%c0_9, %c0_10] : memref<1x8xf32, #tpu.memory_space<vmem>>, vector<1x8xf32>
    %cst_11 = arith.constant dense<0.000000e+00> : vector<1x128xf32>
    %13 = tpu.matmul %12, %10, %cst_11 {dimension_numbers = #tpu.dot_dimension_numbers<[1], [0], [0], [1], [0, 0, 1, 1], [], []>} : vector<1x8xf32>, vector<8x128xf32>, vector<1x128xf32> -> vector<1x128xf32>
    %14 = arith.addf %11, %13 : vector<1x128xf32>
    %c0_12 = arith.constant 0 : index
    %c0_13 = arith.constant 0 : index
    %15 = vector.load %arg8[%c0_12, %c0_13] : memref<1x128xf32, #tpu.memory_space<vmem>>, vector<1x128xf32>
    tpu.vector_store %arg8[%c0_12, %c0_13], %14 {strides = array<i32>} : memref<1x128xf32, #tpu.memory_space<vmem>>, vector<1x128xf32>,
    %c0_i32_14 = arith.constant 0 : i32
    %16 = arith.cmpi eq, %arg0, %c0_i32_14 : i32
    %17 = arith.extui %16 : i1 to i32
    %c0_i32_15 = arith.constant 0 : i32
    %18 = arith.cmpi ne, %17, %c0_i32_15 : i32
    scf.if %18 {
      %c0_16 = arith.constant 0 : index
      %c0_17 = arith.constant 0 : index
      %19 = vector.load %arg8[%c0_16, %c0_17] : memref<1x128xf32, #tpu.memory_space<vmem>>, vector<1x128xf32>
      %c0_18 = arith.constant 0 : index
      %c0_19 = arith.constant 0 : index
      %20 = vector.load %arg5[%c0_18, %c0_19] : memref<128x128xf32, #tpu.memory_space<vmem>>, vector<128x128xf32>
      %cst_20 = arith.constant dense<0.000000e+00> : vector<1x128xf32>
      %21 = tpu.matmul %19, %20, %cst_20 {dimension_numbers = #tpu.dot_dimension_numbers<[1], [0], [0], [1], [0, 0, 1, 1], [], []>} : vector<1x128xf32>, vector<128x128xf32>, vector<1x128xf32> -> vector<1x128xf32>
      %c0_21 = arith.constant 0 : index
      %c0_22 = arith.constant 0 : index
      %22 = vector.load %arg6[%c0_21, %c0_22] : memref<1x128xf32, #tpu.memory_space<vmem>>, vector<1x128xf32>
      %23 = arith.addf %21, %22 : vector<1x128xf32>
      %c0_23 = arith.constant 0 : index
      %c0_24 = arith.constant 0 : index
      %24 = vector.load %arg7[%c0_23, %c0_24] : memref<1x128xf32, #tpu.memory_space<vmem>>, vector<1x128xf32>
      tpu.vector_store %arg7[%c0_23, %c0_24], %23 {strides = array<i32>} : memref<1x128xf32, #tpu.memory_space<vmem>>, vector<1x128xf32>,
    } else {
    }
    return
  }
  func.func @transform_0(%arg0: i32) -> (i32, i32) {
    %c0_i32 = arith.constant 0 : i32
    %c0_i32_0 = arith.constant 0 : i32
    return %arg0, %c0_i32 : i32, i32
  }
  func.func @transform_1(%arg0: i32) -> (i32, i32) {
    %c0_i32 = arith.constant 0 : i32
    %c0_i32_0 = arith.constant 0 : i32
    %c0_i32_1 = arith.constant 0 : i32
    return %c0_i32, %c0_i32_0 : i32, i32
  }
  func.func @transform_2(%arg0: i32) -> (i32, i32) {
    %c0_i32 = arith.constant 0 : i32
    %c0_i32_0 = arith.constant 0 : i32
    return %c0_i32, %arg0 : i32, i32
  }
  func.func @transform_3(%arg0: i32) -> (i32, i32) {
    %c0_i32 = arith.constant 0 : i32
    %c0_i32_0 = arith.constant 0 : i32
    %c0_i32_1 = arith.constant 0 : i32
    return %c0_i32, %c0_i32_0 : i32, i32
  }
  func.func @transform_4(%arg0: i32) -> (i32, i32) {
    %c0_i32 = arith.constant 0 : i32
    %c0_i32_0 = arith.constant 0 : i32
    %c0_i32_1 = arith.constant 0 : i32
    return %c0_i32, %c0_i32_0 : i32, i32
  }
  func.func @transform_5(%arg0: i32) -> (i32, i32) {
    %c0_i32 = arith.constant 0 : i32
    %c0_i32_0 = arith.constant 0 : i32
    %c0_i32_1 = arith.constant 0 : i32
    return %c0_i32, %c0_i32_0 : i32, i32
  }
  func.func @transform_6(%arg0: i32) -> (i32, i32) {
    %c0_i32 = arith.constant 0 : i32
    %c0_i32_0 = arith.constant 0 : i32
    %c0_i32_1 = arith.constant 0 : i32
    return %c0_i32, %c0_i32_0 : i32, i32
  }
}

</mosaic_0001>

<llo_original>
// kernel: tpu_custom_call.1
$region0: #{tpu_custom_call.1}
  #allocation0 [shape = 'u32[]', space=smem, size = 0x4, offset = 0x4, fixed_abs, tag = 'smem constant byte address 0x4 - core index']
  #allocation1 [shape = 'u32[144,128]{1,0:T(1,128)}', space=vmem, size = 0x12000, scoped, tag = 'internal scratch']
  #allocation2 [shape = 'f32[1,128]{1,0:T(1,128)}', space=vmem, size = 0x200, scoped, tag = 'scratch operand']
  %s0 = inlined_call_operand.hbm [shape: f32[8,128], index: 0, kind: input, shape index: {}]
  %s1 = inlined_call_operand.hbm [shape: f32[128,128], index: 1, kind: input, shape index: {}]
  %s2 = inlined_call_operand.vmem [shape: f32[1,8], index: 2, kind: input, shape index: {}]
  %s3 = inlined_call_operand.vmem [shape: f32[1,128], index: 3, kind: input, shape index: {}]
  %s4 = inlined_call_operand.hbm [shape: f32[128,128], index: 4, kind: input, shape index: {}]
  %s5 = inlined_call_operand.vmem [shape: f32[1,128], index: 5, kind: input, shape index: {}]
  %s6 = inlined_call_operand.hbm [shape: f32[1,128], index: 6, kind: output, shape index: {}]
  %s7 = sld [smem:[#allocation0]]
  $region54: #{tpu_custom_call.1} parent=0
    _
  %s9 = ssub.s32 1, %s7
  %s10 = scalar_select 0, %s9, %s7
  $region1: #{tpu_custom_call.1} parent=0
    #allocation3 [shape = 'u8[4096]{0}', space=vmem, size = 0x1000, scoped, tag = 'input window, operand 0, single buffered']
    #allocation4 [shape = 's32[1]{0}', space=sflag, size = 0x4, scoped, tag = 'scoped memory for tpu_custom_call.1']
    #allocation5 [shape = 's32[1]{0}', space=sflag, size = 0x4, scoped, tag = 'scoped memory for tpu_custom_call.1']
    #allocation6 [shape = 'u8[65536]{0}', space=vmem, size = 0x10000, scoped, tag = 'input window, operand 1, single buffered']
    #allocation7 [shape = 's32[1]{0}', space=sflag, size = 0x4, scoped, tag = 'scoped memory for tpu_custom_call.1']
    #allocation8 [shape = 'u8[65536]{0}', space=vmem, size = 0x10000, scoped, tag = 'input window, operand 4, single buffered']
    #allocation9 [shape = 'u8[512]{0}', space=vmem, size = 0x400, scoped, tag = 'output window, operand 0, single buffered']
    %11 = vsyncpa [#allocation4], 0
    %12 = vsyncpa [#allocation7], 0
    %13 = vsyncpa [#allocation5], 0
    // Predicated region
    $region2: #{tpu_custom_call.1} parent=1 // pred_check
      _
    $region3: #{tpu_custom_call.1} parent=1 // pred_check_branch
      %15 = sbr.rel (0) target = $region5
    $region4: #{tpu_custom_call.1} parent=1 // pred_region
      %s17 = ssub.s32 128, 128
      %18 = vsyncadd [#allocation4], %s17
      %s20 = sshll.u32 [#allocation3], 4
      %s21 = int_to_ptr.vmem [resolvable:$true] %s20
      %23 = dma.hbm_to_vmem [thread:$0]  %s0, 128, %s21, [#allocation4]
    $region5: #{tpu_custom_call.1} parent=1 // pred_fallthru
      _
    // Predicated region
    $region6: #{tpu_custom_call.1} parent=1 // pred_check
      _
    $region7: #{tpu_custom_call.1} parent=1 // pred_check_branch
      %25 = sbr.rel (0) target = $region9
    $region8: #{tpu_custom_call.1} parent=1 // pred_region
      %s27 = ssub.s32 2048, 2048
      %28 = vsyncadd [#allocation7], %s27
      %s29 = sshll.u32 [#allocation6], 4
      %s30 = int_to_ptr.vmem [resolvable:$true] %s29
      %35 = dma.hbm_to_vmem [thread:$0]  %s1, 2048, %s30, [#allocation7], 128, 128, 8
    $region9: #{tpu_custom_call.1} parent=1 // pred_fallthru
      _
    // Predicated region
    $region10: #{tpu_custom_call.1} parent=1 // pred_check
      _
    $region11: #{tpu_custom_call.1} parent=1 // pred_check_branch
      %37 = sbr.rel (0) target = $region13
    $region12: #{tpu_custom_call.1} parent=1 // pred_region
      _
    $region13: #{tpu_custom_call.1} parent=1 // pred_fallthru
      _
    // Predicated region
    $region14: #{tpu_custom_call.1} parent=1 // pred_check
      _
    $region15: #{tpu_custom_call.1} parent=1 // pred_check_branch
      %39 = sbr.rel (0) target = $region17
    $region16: #{tpu_custom_call.1} parent=1 // pred_region
      _
    $region17: #{tpu_custom_call.1} parent=1 // pred_fallthru
      _
    // Predicated region
    $region18: #{tpu_custom_call.1} parent=1 // pred_check
      _
    $region19: #{tpu_custom_call.1} parent=1 // pred_check_branch
      %41 = sbr.rel (0) target = $region21
    $region20: #{tpu_custom_call.1} parent=1 // pred_region
      %s43 = ssub.s32 2048, 2048
      %44 = vsyncadd [#allocation7], %s43
      %s45 = sshll.u32 [#allocation8], 4
      %s46 = int_to_ptr.vmem [resolvable:$true] %s45
      %51 = dma.hbm_to_vmem [thread:$0]  %s4, 2048, %s46, [#allocation7], 128, 128, 8
    $region21: #{tpu_custom_call.1} parent=1 // pred_fallthru
      _
    // Predicated region
    $region22: #{tpu_custom_call.1} parent=1 // pred_check
      _
    $region23: #{tpu_custom_call.1} parent=1 // pred_check_branch
      %53 = sbr.rel (0) target = $region25
    $region24: #{tpu_custom_call.1} parent=1 // pred_region
      _
    $region25: #{tpu_custom_call.1} parent=1 // pred_fallthru
      _
    // Predicated region
    $region26: #{tpu_custom_call.1} parent=1 // pred_check
      _
    $region27: #{tpu_custom_call.1} parent=1 // pred_check_branch
      %55 = sbr.rel (0) target = $region29
    $region28: #{tpu_custom_call.1} parent=1 // pred_region
      %56 = dma.done [#allocation4], 128
    $region29: #{tpu_custom_call.1} parent=1 // pred_fallthru
      _
    // Predicated region
    $region30: #{tpu_custom_call.1} parent=1 // pred_check
      _
    $region31: #{tpu_custom_call.1} parent=1 // pred_check_branch
      %58 = sbr.rel (0) target = $region33
    $region32: #{tpu_custom_call.1} parent=1 // pred_region
      %59 = dma.done [#allocation7], 2048
    $region33: #{tpu_custom_call.1} parent=1 // pred_fallthru
      _
    // Predicated region
    $region34: #{tpu_custom_call.1} parent=1 // pred_check
      _
    $region35: #{tpu_custom_call.1} parent=1 // pred_check_branch
      %61 = sbr.rel (0) target = $region37
    $region36: #{tpu_custom_call.1} parent=1 // pred_region
      %62 = dma.done [#allocation7], 2048
    $region37: #{tpu_custom_call.1} parent=1 // pred_fallthru
      _
    %p63 = scmp.eq.s32.totalorder 0, 0
    // Predicated region
    $region38: #{tpu_custom_call.1} parent=1 // pred_check
      %p64 = pneg %p63
    $region39: #{tpu_custom_call.1} parent=1 // pred_check_branch
      %66 = sbr.rel (%p64) target = $region41
    $region40: #{tpu_custom_call.1} parent=1 // pred_region
      %67 = vst [vmem:[#allocation2] sm:$0x1] 0.0
    $region41: #{tpu_custom_call.1} parent=1 // pred_fallthru
      _
    %v68 = vld [vmem:[#allocation3] sm:$0xff]
    %v69 = vld [vmem:[#allocation6] sm:$0xff]
    %v70 = vld [vmem:[#allocation6 + $0x8] sm:$0xff]
    %v71 = vld [vmem:[#allocation6 + $0x10] sm:$0xff]
    %v72 = vld [vmem:[#allocation6 + $0x18] sm:$0xff]
    %v73 = vld [vmem:[#allocation6 + $0x20] sm:$0xff]
    %v74 = vld [vmem:[#allocation6 + $0x28] sm:$0xff]
    %v75 = vld [vmem:[#allocation6 + $0x30] sm:$0xff]
    %v76 = vld [vmem:[#allocation6 + $0x38] sm:$0xff]
    %v77 = vld [vmem:[#allocation6 + $0x40] sm:$0xff]
    %v78 = vld [vmem:[#allocation6 + $0x48] sm:$0xff]
    %v79 = vld [vmem:[#allocation6 + $0x50] sm:$0xff]
    %v80 = vld [vmem:[#allocation6 + $0x58] sm:$0xff]
    %v81 = vld [vmem:[#allocation6 + $0x60] sm:$0xff]
    %v82 = vld [vmem:[#allocation6 + $0x68] sm:$0xff]
    %v83 = vld [vmem:[#allocation6 + $0x70] sm:$0xff]
    %v84 = vld [vmem:[#allocation6 + $0x78] sm:$0xff]
    %v85 = vld [vmem:[%s3] sm:$0x1]
    %v87 = vlaneseq
    %v88 = vshrl.u32 %v87, 7
    %v89 = vsub.s32 0, %v88
    %v90 = vrot.slane %v85, %v89
    %92 = vmatprep.subr.mxu0 0.0
    %93 = vmatpush1.msra.mxu0 %v69
    %94 = vmatprep.subr.mxu0 0.0
    %95 = vmatpush1.msra.mxu0 %v70
    %96 = vmatprep.subr.mxu0 0.0
    %97 = vmatpush1.msra.mxu0 %v71
    %98 = vmatprep.subr.mxu0 0.0
    %99 = vmatpush1.msra.mxu0 %v72
    %100 = vmatprep.subr.mxu0 0.0
    %101 = vmatpush1.msra.mxu0 %v73
    %102 = vmatprep.subr.mxu0 0.0
    %103 = vmatpush1.msra.mxu0 %v74
    %104 = vmatprep.subr.mxu0 0.0
    %105 = vmatpush1.msra.mxu0 %v75
    %106 = vmatprep.subr.mxu0 0.0
    %107 = vmatpush1.msra.mxu0 %v76
    %108 = vmatprep.subr.mxu0 0.0
    %109 = vmatpush1.msra.mxu0 %v77
    %110 = vmatprep.subr.mxu0 0.0
    %111 = vmatpush1.msra.mxu0 %v78
    %112 = vmatprep.subr.mxu0 0.0
    %113 = vmatpush1.msra.mxu0 %v79
    %114 = vmatprep.subr.mxu0 0.0
    %115 = vmatpush1.msra.mxu0 %v80
    %116 = vmatprep.subr.mxu0 0.0
    %117 = vmatpush1.msra.mxu0 %v81
    %118 = vmatprep.subr.mxu0 0.0
    %119 = vmatpush1.msra.mxu0 %v82
    %120 = vmatprep.subr.mxu0 0.0
    %121 = vmatpush1.msra.mxu0 %v83
    %122 = vmatprep.subr.mxu0 0.0
    %123 = vmatpush1.msra.mxu0 %v84
    %124 = vmatprep.subr.mxu0 0.0
    %125 = vmatpush1.msra.mxu0 0.0
    %126 = vmatprep.subr.mxu0 0.0
    %127 = vmatpush1.msra.mxu0 0.0
    %128 = vmatprep.subr.mxu0 0.0
    %129 = vmatpush1.msra.mxu0 0.0
    %130 = vmatprep.subr.mxu0 0.0
    %131 = vmatpush1.msra.mxu0 0.0
    %132 = vmatprep.subr.mxu0 0.0
    %133 = vmatpush1.msra.mxu0 0.0
    %134 = vmatprep.subr.mxu0 0.0
    %135 = vmatpush1.msra.mxu0 0.0
    %136 = vmatprep.subr.mxu0 0.0
    %137 = vmatpush1.msra.mxu0 0.0
    %138 = vmatprep.subr.mxu0 0.0
    %139 = vmatpush1.msra.mxu0 0.0
    %140 = vmatprep.subr.mxu0 0.0
    %141 = vmatpush1.msra.mxu0 0.0
    %142 = vmatprep.subr.mxu0 0.0
    %143 = vmatpush1.msra.mxu0 0.0
    %144 = vmatprep.subr.mxu0 0.0
    %145 = vmatpush1.msra.mxu0 0.0
    %146 = vmatprep.subr.mxu0 0.0
    %147 = vmatpush1.msra.mxu0 0.0
    %148 = vmatprep.subr.mxu0 0.0
    %149 = vmatpush1.msra.mxu0 0.0
    %150 = vmatprep.subr.mxu0 0.0
    %151 = vmatpush1.msra.mxu0 0.0
    %152 = vmatprep.subr.mxu0 0.0
    %153 = vmatpush1.msra.mxu0 0.0
    %154 = vmatprep.subr.mxu0 0.0
    %155 = vmatpush1.msra.mxu0 0.0
    %156 = vmatprep.mubr.f32.mxu0 0.0
    %157 = vmatmul.mubr.f32.gmra.mrb[0].mxu0 %v68
    %v158 = vpop.f32.mrb[0].mxu0
    %v159 = vadd.f32 %v90, %v158
    %v160 = vpop.f32.mrb[0].mxu0
    %161 = vdwg.mxu0
    %v162 = vmax.f32 %v159, 0.0
    %v163 = vld [vmem:[#allocation2] sm:$0x1]
    %v164 = vld [vmem:[%s2] sm:$0x1]
    %vm165 = vcmask 64512
    %v167 = vsel %vm165, %v164, 0
    %169 = vmatprep.subr.mxu0 0.0
    %170 = vmatpush1.msra.mxu0 %v162
    %171 = vmatprep.subr.mxu0 0.0
    %172 = vmatpush1.msra.mxu0 0.0
    %173 = vmatprep.subr.mxu0 0.0
    %174 = vmatpush1.msra.mxu0 0.0
    %175 = vmatprep.subr.mxu0 0.0
    %176 = vmatpush1.msra.mxu0 0.0
    %177 = vmatprep.subr.mxu0 0.0
    %178 = vmatpush1.msra.mxu0 0.0
    %179 = vmatprep.subr.mxu0 0.0
    %180 = vmatpush1.msra.mxu0 0.0
    %181 = vmatprep.subr.mxu0 0.0
    %182 = vmatpush1.msra.mxu0 0.0
    %183 = vmatprep.subr.mxu0 0.0
    %184 = vmatpush1.msra.mxu0 0.0
    %185 = vmatprep.subr.mxu0 0.0
    %186 = vmatpush1.msra.mxu0 0.0
    %187 = vmatprep.subr.mxu0 0.0
    %188 = vmatpush1.msra.mxu0 0.0
    %189 = vmatprep.subr.mxu0 0.0
    %190 = vmatpush1.msra.mxu0 0.0
    %191 = vmatprep.subr.mxu0 0.0
    %192 = vmatpush1.msra.mxu0 0.0
    %193 = vmatprep.subr.mxu0 0.0
    %194 = vmatpush1.msra.mxu0 0.0
    %195 = vmatprep.subr.mxu0 0.0
    %196 = vmatpush1.msra.mxu0 0.0
    %197 = vmatprep.subr.mxu0 0.0
    %198 = vmatpush1.msra.mxu0 0.0
    %199 = vmatprep.subr.mxu0 0.0
    %200 = vmatpush1.msra.mxu0 0.0
    %201 = vmatprep.subr.mxu0 0.0
    %202 = vmatpush1.msra.mxu0 0.0
    %203 = vmatprep.subr.mxu0 0.0
    %204 = vmatpush1.msra.mxu0 0.0
    %205 = vmatprep.subr.mxu0 0.0
    %206 = vmatpush1.msra.mxu0 0.0
    %207 = vmatprep.subr.mxu0 0.0
    %208 = vmatpush1.msra.mxu0 0.0
    %209 = vmatprep.subr.mxu0 0.0
    %210 = vmatpush1.msra.mxu0 0.0
    %211 = vmatprep.subr.mxu0 0.0
    %212 = vmatpush1.msra.mxu0 0.0
    %213 = vmatprep.subr.mxu0 0.0
    %214 = vmatpush1.msra.mxu0 0.0
    %215 = vmatprep.subr.mxu0 0.0
    %216 = vmatpush1.msra.mxu0 0.0
    %217 = vmatprep.subr.mxu0 0.0
    %218 = vmatpush1.msra.mxu0 0.0
    %219 = vmatprep.subr.mxu0 0.0
    %220 = vmatpush1.msra.mxu0 0.0
    %221 = vmatprep.subr.mxu0 0.0
    %222 = vmatpush1.msra.mxu0 0.0
    %223 = vmatprep.subr.mxu0 0.0
    %224 = vmatpush1.msra.mxu0 0.0
    %225 = vmatprep.subr.mxu0 0.0
    %226 = vmatpush1.msra.mxu0 0.0
    %227 = vmatprep.subr.mxu0 0.0
    %228 = vmatpush1.msra.mxu0 0.0
    %229 = vmatprep.subr.mxu0 0.0
    %230 = vmatpush1.msra.mxu0 0.0
    %231 = vmatprep.subr.mxu0 0.0
    %232 = vmatpush1.msra.mxu0 0.0
    %233 = vmatprep.mubr.f32.mxu0 0.0
    %234 = vmatmul.mubr.f32.gmra.mrb[0].mxu0 %v167
    %v235 = vpop.f32.mrb[0].mxu0
    %v236 = vadd.f32 0.0, %v235
    %v237 = vpop.f32.mrb[0].mxu0
    %238 = vdwg.mxu0
    %v239 = vadd.f32 %v163, %v236
    %240 = vst [vmem:[#allocation2] sm:$0x1] %v239
    // Predicated region
    $region42: #{tpu_custom_call.1} parent=1 // pred_check
      %p241 = pneg %p63
    $region43: #{tpu_custom_call.1} parent=1 // pred_check_branch
      %243 = sbr.rel (%p241) target = $region45
    $region44: #{tpu_custom_call.1} parent=1 // pred_region
      %v244 = vld [vmem:[#allocation2] sm:$0x1]
      %v245 = vld [vmem:[#allocation8] sm:$0xff]
      %v246 = vld [vmem:[#allocation8 + $0x8] sm:$0xff]
      %v247 = vld [vmem:[#allocation8 + $0x10] sm:$0xff]
      %v248 = vld [vmem:[#allocation8 + $0x18] sm:$0xff]
      %v249 = vld [vmem:[#allocation8 + $0x20] sm:$0xff]
      %v250 = vld [vmem:[#allocation8 + $0x28] sm:$0xff]
      %v251 = vld [vmem:[#allocation8 + $0x30] sm:$0xff]
      %v252 = vld [vmem:[#allocation8 + $0x38] sm:$0xff]
      %v253 = vld [vmem:[#allocation8 + $0x40] sm:$0xff]
      %v254 = vld [vmem:[#allocation8 + $0x48] sm:$0xff]
      %v255 = vld [vmem:[#allocation8 + $0x50] sm:$0xff]
      %v256 = vld [vmem:[#allocation8 + $0x58] sm:$0xff]
      %v257 = vld [vmem:[#allocation8 + $0x60] sm:$0xff]
      %v258 = vld [vmem:[#allocation8 + $0x68] sm:$0xff]
      %v259 = vld [vmem:[#allocation8 + $0x70] sm:$0xff]
      %v260 = vld [vmem:[#allocation8 + $0x78] sm:$0xff]
      %v261 = vld [vmem:[%s5] sm:$0x1]
      %262 = vmatprep.subr.mxu0 0.0
      %263 = vmatpush1.msra.mxu0 %v245
      %264 = vmatprep.subr.mxu0 0.0
      %265 = vmatpush1.msra.mxu0 %v246
      %266 = vmatprep.subr.mxu0 0.0
      %267 = vmatpush1.msra.mxu0 %v247
      %268 = vmatprep.subr.mxu0 0.0
      %269 = vmatpush1.msra.mxu0 %v248
      %270 = vmatprep.subr.mxu0 0.0
      %271 = vmatpush1.msra.mxu0 %v249
      %272 = vmatprep.subr.mxu0 0.0
      %273 = vmatpush1.msra.mxu0 %v250
      %274 = vmatprep.subr.mxu0 0.0
      %275 = vmatpush1.msra.mxu0 %v251
      %276 = vmatprep.subr.mxu0 0.0
      %277 = vmatpush1.msra.mxu0 %v252
      %278 = vmatprep.subr.mxu0 0.0
      %279 = vmatpush1.msra.mxu0 %v253
      %280 = vmatprep.subr.mxu0 0.0
      %281 = vmatpush1.msra.mxu0 %v254
      %282 = vmatprep.subr.mxu0 0.0
      %283 = vmatpush1.msra.mxu0 %v255
      %284 = vmatprep.subr.mxu0 0.0
      %285 = vmatpush1.msra.mxu0 %v256
      %286 = vmatprep.subr.mxu0 0.0
      %287 = vmatpush1.msra.mxu0 %v257
      %288 = vmatprep.subr.mxu0 0.0
      %289 = vmatpush1.msra.mxu0 %v258
      %290 = vmatprep.subr.mxu0 0.0
      %291 = vmatpush1.msra.mxu0 %v259
      %292 = vmatprep.subr.mxu0 0.0
      %293 = vmatpush1.msra.mxu0 %v260
      %294 = vmatprep.subr.mxu0 0.0
      %295 = vmatpush1.msra.mxu0 0.0
      %296 = vmatprep.subr.mxu0 0.0
      %297 = vmatpush1.msra.mxu0 0.0
      %298 = vmatprep.subr.mxu0 0.0
      %299 = vmatpush1.msra.mxu0 0.0
      %300 = vmatprep.subr.mxu0 0.0
      %301 = vmatpush1.msra.mxu0 0.0
      %302 = vmatprep.subr.mxu0 0.0
      %303 = vmatpush1.msra.mxu0 0.0
      %304 = vmatprep.subr.mxu0 0.0
      %305 = vmatpush1.msra.mxu0 0.0
      %306 = vmatprep.subr.mxu0 0.0
      %307 = vmatpush1.msra.mxu0 0.0
      %308 = vmatprep.subr.mxu0 0.0
      %309 = vmatpush1.msra.mxu0 0.0
      %310 = vmatprep.subr.mxu0 0.0
      %311 = vmatpush1.msra.mxu0 0.0
      %312 = vmatprep.subr.mxu0 0.0
      %313 = vmatpush1.msra.mxu0 0.0
      %314 = vmatprep.subr.mxu0 0.0
      %315 = vmatpush1.msra.mxu0 0.0
      %316 = vmatprep.subr.mxu0 0.0
      %317 = vmatpush1.msra.mxu0 0.0
      %318 = vmatprep.subr.mxu0 0.0
      %319 = vmatpush1.msra.mxu0 0.0
      %320 = vmatprep.subr.mxu0 0.0
      %321 = vmatpush1.msra.mxu0 0.0
      %322 = vmatprep.subr.mxu0 0.0
      %323 = vmatpush1.msra.mxu0 0.0
      %324 = vmatprep.subr.mxu0 0.0
      %325 = vmatpush1.msra.mxu0 0.0
      %326 = vmatprep.mubr.f32.mxu0 0.0
      %327 = vmatmul.mubr.f32.gmra.mrb[0].mxu0 %v244
      %v328 = vpop.f32.mrb[0].mxu0
      %v329 = vadd.f32 %v261, %v328
      %v330 = vpop.f32.mrb[0].mxu0
      %331 = vdwg.mxu0
      %332 = vst [vmem:[#allocation9] sm:$0x1] %v329
    $region45: #{tpu_custom_call.1} parent=1 // pred_fallthru
      _
    // Predicated region
    $region46: #{tpu_custom_call.1} parent=1 // pred_check
      _
    $region47: #{tpu_custom_call.1} parent=1 // pred_check_branch
      %334 = sbr.rel (0) target = $region49
    $region48: #{tpu_custom_call.1} parent=1 // pred_region
      %s336 = ssub.s32 16, 16
      %337 = vsyncadd [#allocation5], %s336
      %s339 = sshll.u32 [#allocation9], 4
      %s340 = int_to_ptr.vmem [resolvable:$true] %s339
      %342 = dma.vmem_to_hbm [thread:$0]  %s340, 16, %s6, [#allocation5]
    $region49: #{tpu_custom_call.1} parent=1 // pred_fallthru
      _
    // Predicated region
    $region50: #{tpu_custom_call.1} parent=1 // pred_check
      _
    $region51: #{tpu_custom_call.1} parent=1 // pred_check_branch
      %344 = sbr.rel (0) target = $region53
    $region52: #{tpu_custom_call.1} parent=1 // pred_region
      %345 = dma.done [#allocation5], 16
    $region53: #{tpu_custom_call.1} parent=1 // pred_fallthru
      _
    %346 = vsyncpa [#allocation4], 1
    %347 = vsyncpa [#allocation7], 1
    %348 = vsyncpa [#allocation5], 1

</llo_original>
